<compile_context>
chip_gen: v7x
topology: tpu7x:2x2x1
jax: 0.10.0
libtpu: 0.0.40
codegen_flags: <defaults>
</compile_context>

<pallas_src>
import math

import jax
import jax.numpy as jnp
from jax.experimental import pallas as pl
from jax.experimental.pallas import tpu as pltpu


# Bias padding for padded vocab columns on the KLDiv path.  Padding is always
# at the END of the vocab axis and is never a full tile, so a fully-padded
# vocab tile can never be the first j tile and the online logsumexp is never
# contaminated.  -1e30 is representable in f32/bf16 (would overflow in fp16,
# which is not used here since the output dtype follows x.dtype).
_NEG_BIG = -1e30


def _round_up(x, m):
    return (x + m - 1) // m * m


def _pick_tile(dim, requested, align):
    """Largest tile (multiple of `align`, <= `requested`) dividing the aligned
    dim, so the wrapper never needs whole-tensor pad copies.  Falls back to
    `requested` (accepting a pad) if only tiny divisor tiles exist."""
    aligned = _round_up(dim, align)
    if aligned <= requested:
        return aligned
    best = align
    t = align
    while t <= requested:
        if aligned % t == 0:
            best = t
        t += align
    if best * 2 < requested:
        # A tiny divisor tile would hurt arithmetic intensity more than a
        # one-off wrapper pad copy.
        return requested
    return best


def _logits_kernel(x_ref, w_ref, b_ref, o_ref, acc_ref):
    """CrossEntropy path: one (tm, tn) logits tile, accumulated over K."""
    k = pl.program_id(2)
    nk = pl.num_programs(2)

    @pl.when(k == 0)
    def _():
        acc_ref[...] = jnp.zeros(acc_ref.shape, acc_ref.dtype)

    acc_ref[...] += jnp.dot(x_ref[...], w_ref[...],
                            preferred_element_type=jnp.float32)

    @pl.when(k == nk - 1)
    def _():
        # Bias folded into the K epilogue (added exactly once per tile).
        o_ref[...] = (acc_ref[...] + b_ref[...]).astype(o_ref.dtype)


def _fused_log_softmax_kernel(x_ref, w_ref, b_ref, o_ref, acc_ref, m_ref,
                              l_ref):
    """KLDiv path, fused: linear + log_softmax in a single HBM pass.

    o_ref is a resident (tm, n_vocab_tiles, tn) row panel (output index map is
    constant in j and k); logits tiles are staged into it and `logits - lse`
    is applied in place at the last vocab tile, so logits never round-trip
    through HBM.  NOTE: program_id/num_programs are read only at the top of
    the body (outside pl.when) -- required for interpret-mode lowering.
    """
    j = pl.program_id(1)
    k = pl.program_id(2)
    nj = pl.num_programs(1)
    nk = pl.num_programs(2)

    @pl.when(jnp.logical_and(j == 0, k == 0))
    def _():
        m_ref[...] = jnp.full(m_ref.shape, -jnp.inf, m_ref.dtype)
        l_ref[...] = jnp.zeros(l_ref.shape, l_ref.dtype)

    @pl.when(k == 0)
    def _():
        acc_ref[...] = jnp.zeros(acc_ref.shape, acc_ref.dtype)

    acc_ref[...] += jnp.dot(x_ref[...], w_ref[...],
                            preferred_element_type=jnp.float32)

    @pl.when(k == nk - 1)
    def _():
        logits = acc_ref[...] + b_ref[...]                       # (tm, tn) f32
        # Stage this vocab tile into the resident panel (dynamic index on a
        # non-minor axis -> plain address offset, no lane/sublane shuffles).
        o_ref[:, j, :] = logits.astype(o_ref.dtype)
        # Online (flash-style) logsumexp across vocab tiles.
        m_prev = m_ref[...]
        m_new = jnp.maximum(m_prev, jnp.max(logits, axis=-1, keepdims=True))
        l_ref[...] = (l_ref[...] * jnp.exp(m_prev - m_new)
                      + jnp.sum(jnp.exp(logits - m_new), axis=-1,
                                keepdims=True))
        m_ref[...] = m_new

    @pl.when(jnp.logical_and(j == nj - 1, k == nk - 1))
    def _():
        lse = m_ref[...] + jnp.log(l_ref[...])                   # (tm, 1)
        panel = o_ref[...].astype(jnp.float32)                   # (tm, nj, tn)
        o_ref[...] = (panel - lse[:, :, None]).astype(o_ref.dtype)


def _logits_lse_kernel(x_ref, w_ref, b_ref, o_ref, lse_ref, acc_ref, m_ref,
                       l_ref):
    """KLDiv fallback (huge vocab): emit logits + per-row logsumexp; a second
    elementwise pass finishes log_softmax = logits - lse."""
    j = pl.program_id(1)
    k = pl.program_id(2)
    nj = pl.num_programs(1)
    nk = pl.num_programs(2)

    @pl.when(jnp.logical_and(j == 0, k == 0))
    def _():
        m_ref[...] = jnp.full(m_ref.shape, -jnp.inf, m_ref.dtype)
        l_ref[...] = jnp.zeros(l_ref.shape, l_ref.dtype)

    @pl.when(k == 0)
    def _():
        acc_ref[...] = jnp.zeros(acc_ref.shape, acc_ref.dtype)

    acc_ref[...] += jnp.dot(x_ref[...], w_ref[...],
                            preferred_element_type=jnp.float32)

    @pl.when(k == nk - 1)
    def _():
        logits = acc_ref[...] + b_ref[...]
        o_ref[...] = logits.astype(o_ref.dtype)
        m_prev = m_ref[...]
        m_new = jnp.maximum(m_prev, jnp.max(logits, axis=-1, keepdims=True))
        l_ref[...] = (l_ref[...] * jnp.exp(m_prev - m_new)
                      + jnp.sum(jnp.exp(logits - m_new), axis=-1,
                                keepdims=True))
        m_ref[...] = m_new

    @pl.when(jnp.logical_and(j == nj - 1, k == nk - 1))
    def _():
        lse_ref[...] = m_ref[...] + jnp.log(l_ref[...])


def _log_softmax_finalize_kernel(logits_ref, lse_ref, o_ref):
    # log_softmax = logits - logsumexp(logits), tile-by-tile in f32.
    o_ref[...] = (logits_ref[...].astype(jnp.float32)
                  - lse_ref[...]).astype(o_ref.dtype)


def generator_forward(x, w, b, *, loss_type="CrossEntropyLoss",
                      tm=1024, tn=1024, tk=1024,
                      matmul_dtype=jnp.bfloat16,
                      fused_panel_bytes=16 * 1024 * 1024,
                      vmem_limit_bytes=None):
    """Pallas implementation of Generator.forward.

    x: [batch, seq, d_model]
    w: [d_model, vocab]   (transpose of torch's nn.Linear.weight)
    b: [vocab]
    matmul_dtype: dtype of the MXU inputs (default bf16: ~2x MXU rate and
        half the x/W HBM bytes on v5e/v6e/v7x); accumulation and softmax math
        stay float32.  Pass None for a full-f32 matmul (bit-accurate path).
    fused_panel_bytes: VMEM budget for the resident (tm, vocab) log_softmax
        row panel on the KLDiv path; if the panel cannot fit, falls back to
        logits + lse plus an elementwise finalize pass.
    returns: [batch, seq, vocab]
    """
    assert loss_type in ("CrossEntropyLoss", "KLDivLoss")
    apply_log_softmax = loss_type == "KLDivLoss"
    # TODO(synk): PyTorch's nn.LogSoftmax() with the legacy implicit dim would
    # pick dim=0 for a 3-D input; we apply it over the vocab (last) axis,
    # which is the intended semantics of a generator head.

    batch, seq, d_model = x.shape
    d_model_w, vocab = w.shape
    assert d_model_w == d_model
    out_dtype = x.dtype
    ob = jnp.dtype(out_dtype).itemsize
    in_dtype = matmul_dtype if matmul_dtype is not None else x.dtype
    ib = jnp.dtype(in_dtype).itemsize
    m_align = 16 if (ib < 4 or ob < 4) else 8

    M = batch * seq

    # Tiles that divide the (aligned) dims whenever possible, so the wrapper
    # avoids whole-tensor pad copies of W/x and trailing slices of the logits.
    tn = _pick_tile(vocab, tn, 128)
    tk = _pick_tile(d_model, tk, 128)
    tm = _pick_tile(M, tm, m_align)
    Vp = _round_up(vocab, tn)
    Kp = _round_up(d_model, tk)
    n_vtiles = Vp // tn

    if apply_log_softmax and M >= 2 * m_align and tm >= M:
        # v7x megacore: the KLDiv grid only shards the M axis across the two
        # TensorCores, so keep at least two M tiles when M allows it.
        tm = _round_up((M + 1) // 2, m_align)

    use_fused = False
    if apply_log_softmax and fused_panel_bytes:
        max_tm = (fused_panel_bytes // (Vp * ob)) // m_align * m_align
        if max_tm >= m_align and (max_tm >= 128
                                  or max_tm >= _round_up(M, m_align)):
            tm = min(tm, max_tm)
            use_fused = True

    Mp = _round_up(M, tm)
    grid = (Mp // tm, n_vtiles, Kp // tk)

    # --- wrapper-side padding / casts (no-ops when tiles divide the dims) ---
    # TODO(synk): in a real model, pad/cast W once at parameter-load time
    # instead of on every forward call.
    x2 = x.reshape(M, d_model)
    if (Mp, Kp) != (M, d_model):
        x2 = jnp.pad(x2, ((0, Mp - M), (0, Kp - d_model)))
    wp = w
    if (Kp, Vp) != (d_model, vocab):
        wp = jnp.pad(w, ((0, Kp - d_model), (0, Vp - vocab)))
    b2 = b.reshape(1, vocab).astype(jnp.float32)
    if Vp != vocab:
        # KLDiv: padded vocab columns get a huge negative bias so they do not
        # perturb the online logsumexp; CE: padded columns are sliced off.
        pad_val = _NEG_BIG if apply_log_softmax else 0.0
        b2 = jnp.pad(b2, ((0, 0), (0, Vp - vocab)), constant_values=pad_val)
    if matmul_dtype is not None:
        x2 = x2.astype(matmul_dtype)
        wp = wp.astype(matmul_dtype)

    # --- advisory cost + VMEM budget (sized from actual blocks; fits v7x's
    # 64 MiB as well as v5e/v6e's 128 MiB) ---------------------------------
    cost = pl.CostEstimate(
        flops=2 * Mp * Kp * Vp,
        transcendentals=Mp * Vp if apply_log_softmax else 0,
        bytes_accessed=Mp * Kp * ib + Kp * Vp * ib + Vp * 4 + Mp * Vp * ob)

    if vmem_limit_bytes is None:
        est = 2 * (tm * tk * ib + tk * tn * ib + tn * 4)   # x, W, bias (x2 buf)
        est += tm * tn * 4                                 # f32 accumulator
        if apply_log_softmax:
            est += 4 * tm * 4                              # m / l scratch
            if use_fused:
                est += 2 * tm * Vp * ob                    # resident out panel
            else:
                est += 2 * (tm * tn * ob + tm * 4)         # logits tile + lse
        else:
            est += 2 * tm * tn * ob
        vmem_limit_bytes = max(int(est * 1.4), 32 * 1024 * 1024)

    # --- main kernel --------------------------------------------------------
    in_specs = [
        pl.BlockSpec((tm, tk), lambda i, j, k: (i, k)),    # x row/K tile
        pl.BlockSpec((tk, tn), lambda i, j, k: (k, j)),    # W K/vocab tile
        pl.BlockSpec((1, tn), lambda i, j, k: (0, j)),     # bias vocab tile
    ]
    scratch = [pltpu.VMEM((tm, tn), jnp.float32)]          # f32 accumulator

    if not apply_log_softmax:
        kernel = _logits_kernel
        out_shape = jax.ShapeDtypeStruct((Mp, Vp), out_dtype)
        out_specs = pl.BlockSpec((tm, tn), lambda i, j, k: (i, j))
        dim_sem = ("parallel", "parallel", "arbitrary")
    elif use_fused:
        kernel = _fused_log_softmax_kernel
        # Output laid out (Mp, n_vtiles, tn): same memory layout as (Mp, Vp),
        # so the trailing reshape is free; the block is a resident row panel.
        out_shape = jax.ShapeDtypeStruct((Mp, n_vtiles, tn), out_dtype)
        out_specs = pl.BlockSpec((tm, n_vtiles, tn), lambda i, j, k: (i, 0, 0))
        scratch += [pltpu.VMEM((tm, 1), jnp.float32),      # running max
                    pltpu.VMEM((tm, 1), jnp.float32)]      # running sum
        # vocab axis carries the online-LSE state + resident panel -> serial.
        dim_sem = ("parallel", "arbitrary", "arbitrary")
    else:
        kernel = _logits_lse_kernel
        out_shape = (jax.ShapeDtypeStruct((Mp, Vp), out_dtype),
                     jax.ShapeDtypeStruct((Mp, 1), jnp.float32))
        out_specs = [pl.BlockSpec((tm, tn), lambda i, j, k: (i, j)),
                     pl.BlockSpec((tm, 1), lambda i, j, k: (i, 0))]
        scratch += [pltpu.VMEM((tm, 1), jnp.float32),
                    pltpu.VMEM((tm, 1), jnp.float32)]
        dim_sem = ("parallel", "arbitrary", "arbitrary")

    result = pl.pallas_call(
        kernel,
        out_shape=out_shape,
        grid_spec=pltpu.PrefetchScalarGridSpec(
            num_scalar_prefetch=0,
            grid=grid,
            in_specs=in_specs,
            out_specs=out_specs,
            scratch_shapes=scratch),
        compiler_params=pltpu.CompilerParams(
            dimension_semantics=dim_sem,
            vmem_limit_bytes=vmem_limit_bytes),
        cost_estimate=cost,
    )(x2, wp, b2)

    if not apply_log_softmax:
        out2 = result
    elif use_fused:
        out2 = result.reshape(Mp, Vp)
    else:
        logits, lse = result
        out2 = pl.pallas_call(
            _log_softmax_finalize_kernel,
            out_shape=jax.ShapeDtypeStruct((Mp, Vp), out_dtype),
            grid_spec=pltpu.PrefetchScalarGridSpec(
                num_scalar_prefetch=0,
                grid=(Mp // tm, Vp // tn),
                in_specs=[pl.BlockSpec((tm, tn), lambda i, j: (i, j)),
                          pl.BlockSpec((tm, 1), lambda i, j: (i, 0))],
                out_specs=pl.BlockSpec((tm, tn), lambda i, j: (i, j))),
            compiler_params=pltpu.CompilerParams(
                dimension_semantics=("parallel", "parallel"),
                vmem_limit_bytes=vmem_limit_bytes),
            cost_estimate=pl.CostEstimate(
                flops=Mp * Vp, transcendentals=0,
                bytes_accessed=2 * Mp * Vp * ob + Mp * 4),
            input_output_aliases={0: 0},   # reuse the logits HBM buffer
        )(logits, lse)

    if (Mp, Vp) != (M, vocab):
        out2 = out2[:M, :vocab]
    return out2.reshape(batch, seq, vocab)


def _reference(x, w, b, loss_type):
    out = jnp.einsum("bsd,dv->bsv", x, w) + b
    if loss_type == "KLDivLoss":
        out = jax.nn.log_softmax(out, axis=-1)
    return out


def _make_inputs(key, batch, seq, d_model, vocab):
    kx, kw, kb = jax.random.split(key, 3)
    bound = 1.0 / math.sqrt(d_model)
    w = jax.random.uniform(kw, (d_model, vocab), jnp.float32, -bound, bound)
    b = jax.random.uniform(kb, (vocab,), jnp.float32, -bound, bound)
    x = jax.random.normal(kx, (batch, seq, d_model), jnp.float32)
    return x, w, b


if __name__ == "__main__":
    key = jax.random.PRNGKey(0)
    k1, k2 = jax.random.split(key)

    # --- Small, tile-aligned shapes (module-consistent sizes) ---------------
    batch, seq, d_model, vocab = 2, 8, 32, 128
    x, w, b = _make_inputs(k1, batch, seq, d_model, vocab)

    # Exact-precision checks (f32 MXU inputs).
    for lt in ("CrossEntropyLoss", "KLDivLoss"):
        out = jax.block_until_ready(
            generator_forward(x, w, b, loss_type=lt, matmul_dtype=None))
        ref = _reference(x, w, b, lt)
        assert out.shape == (batch, seq, vocab)
        assert jnp.allclose(out, ref, atol=1e-5, rtol=1e-5), lt

    # --- Ragged shapes + small tiles: padding, multi-tile M/V/K, K
    #     accumulation, online logsumexp across vocab tiles; both the fused
    #     and the two-pass KLDiv paths ---------------------------------------
    b2_, s2_, d2_, v2_ = 3, 5, 160, 200
    x2, w2, bb2 = _make_inputs(k2, b2_, s2_, d2_, v2_)
    ref_ce = _reference(x2, w2, bb2, "CrossEntropyLoss")
    ref_kl = _reference(x2, w2, bb2, "KLDivLoss")

    o_ce = jax.block_until_ready(generator_forward(
        x2, w2, bb2, loss_type="CrossEntropyLoss",
        tm=8, tn=128, tk=128, matmul_dtype=None))
    assert o_ce.shape == (b2_, s2_, v2_)
    assert jnp.allclose(o_ce, ref_ce, atol=1e-4, rtol=1e-4)

    o_kl_fused = jax.block_until_ready(generator_forward(
        x2, w2, bb2, loss_type="KLDivLoss",
        tm=8, tn=128, tk=128, matmul_dtype=None))
    assert jnp.allclose(o_kl_fused, ref_kl, atol=1e-4, rtol=1e-4)

    o_kl_2pass = jax.block_until_ready(generator_forward(
        x2, w2, bb2, loss_type="KLDivLoss",
        tm=8, tn=128, tk=128, matmul_dtype=None, fused_panel_bytes=0))
    assert jnp.allclose(o_kl_2pass, ref_kl, atol=1e-4, rtol=1e-4)

    # --- Default fast path: bf16 MXU inputs, f32 accumulation / softmax -----
    for lt in ("CrossEntropyLoss", "KLDivLoss"):
        ob_ = jax.block_until_ready(generator_forward(x, w, b, loss_type=lt))
        rb_ = _reference(x, w, b, lt)
        assert jnp.allclose(ob_, rb_, atol=1e-1, rtol=1e-1), lt

    print("KERNEL_OK")
</pallas_src>

<mosaic_0001>
module attributes {stable_mosaic.version = 11 : i64} {
  func.func @_logits_kernel(%arg0: i32, %arg1: i32, %arg2: i32, %arg3: memref<16x128xf32, #tpu.memory_space<vmem>>, %arg4: memref<128x128xf32, #tpu.memory_space<vmem>>, %arg5: memref<1x128xf32, #tpu.memory_space<vmem>>, %arg6: memref<16x128xf32, #tpu.memory_space<vmem>>, %arg7: memref<16x128xf32, #tpu.memory_space<vmem>>) attributes {dimension_semantics = [#tpu.dimension_semantics<parallel>, #tpu.dimension_semantics<parallel>, #tpu.dimension_semantics<arbitrary>], iteration_bounds = array<i64: 1, 1, 1>, scalar_prefetch = 0 : i64, scratch_operands = 1 : i64, tpu.core_type = #tpu.core_type<tc>, window_params = [{transform_indices = @transform_0, window_bounds = array<i64: 16, 128>}, {transform_indices = @transform_1, window_bounds = array<i64: 128, 128>}, {transform_indices = @transform_2, window_bounds = array<i64: 1, 128>}, {transform_indices = @transform_3, window_bounds = array<i64: 16, 128>}]} {
    %c0_i32 = arith.constant 0 : i32
    %0 = arith.cmpi eq, %arg2, %c0_i32 : i32
    %1 = arith.extui %0 : i1 to i32
    %c0_i32_0 = arith.constant 0 : i32
    %2 = arith.cmpi ne, %1, %c0_i32_0 : i32
    scf.if %2 {
      %cst_10 = arith.constant 0.000000e+00 : f32
      %12 = vector.broadcast %cst_10 : f32 to vector<16x128xf32>
      %c0_11 = arith.constant 0 : index
      %c0_12 = arith.constant 0 : index
      %13 = vector.load %arg7[%c0_11, %c0_12] : memref<16x128xf32, #tpu.memory_space<vmem>>, vector<16x128xf32>
      tpu.vector_store %arg7[%c0_11, %c0_12], %12 {strides = array<i32>} : memref<16x128xf32, #tpu.memory_space<vmem>>, vector<16x128xf32>,
    } else {
    }
    %c0 = arith.constant 0 : index
    %c0_1 = arith.constant 0 : index
    %3 = vector.load %arg7[%c0, %c0_1] : memref<16x128xf32, #tpu.memory_space<vmem>>, vector<16x128xf32>
    %c0_2 = arith.constant 0 : index
    %c0_3 = arith.constant 0 : index
    %4 = vector.load %arg3[%c0_2, %c0_3] : memref<16x128xf32, #tpu.memory_space<vmem>>, vector<16x128xf32>
    %c0_4 = arith.constant 0 : index
    %c0_5 = arith.constant 0 : index
    %5 = vector.load %arg4[%c0_4, %c0_5] : memref<128x128xf32, #tpu.memory_space<vmem>>, vector<128x128xf32>
    %cst = arith.constant dense<0.000000e+00> : vector<16x128xf32>
    %6 = tpu.matmul %4, %5, %cst {dimension_numbers = #tpu.dot_dimension_numbers<[1], [0], [0], [1], [0, 0, 1, 1], [], []>} : vector<16x128xf32>, vector<128x128xf32>, vector<16x128xf32> -> vector<16x128xf32>
    %7 = arith.addf %3, %6 : vector<16x128xf32>
    %c0_6 = arith.constant 0 : index
    %c0_7 = arith.constant 0 : index
    %8 = vector.load %arg7[%c0_6, %c0_7] : memref<16x128xf32, #tpu.memory_space<vmem>>, vector<16x128xf32>
    tpu.vector_store %arg7[%c0_6, %c0_7], %7 {strides = array<i32>} : memref<16x128xf32, #tpu.memory_space<vmem>>, vector<16x128xf32>,
    %c0_i32_8 = arith.constant 0 : i32
    %9 = arith.cmpi eq, %arg2, %c0_i32_8 : i32
    %10 = arith.extui %9 : i1 to i32
    %c0_i32_9 = arith.constant 0 : i32
    %11 = arith.cmpi ne, %10, %c0_i32_9 : i32
    scf.if %11 {
      %c0_10 = arith.constant 0 : index
      %c0_11 = arith.constant 0 : index
      %12 = vector.load %arg7[%c0_10, %c0_11] : memref<16x128xf32, #tpu.memory_space<vmem>>, vector<16x128xf32>
      %c0_12 = arith.constant 0 : index
      %c0_13 = arith.constant 0 : index
      %13 = vector.load %arg5[%c0_12, %c0_13] : memref<1x128xf32, #tpu.memory_space<vmem>>, vector<1x128xf32>
      %14 = vector.broadcast %13 : vector<1x128xf32> to vector<16x128xf32>
      %15 = arith.addf %12, %14 : vector<16x128xf32>
      %c0_14 = arith.constant 0 : index
      %c0_15 = arith.constant 0 : index
      %16 = vector.load %arg6[%c0_14, %c0_15] : memref<16x128xf32, #tpu.memory_space<vmem>>, vector<16x128xf32>
      tpu.vector_store %arg6[%c0_14, %c0_15], %15 {strides = array<i32>} : memref<16x128xf32, #tpu.memory_space<vmem>>, vector<16x128xf32>,
    } else {
    }
    return
  }
  func.func @transform_0(%arg0: i32, %arg1: i32, %arg2: i32) -> (i32, i32) {
    %c0_i32 = arith.constant 0 : i32
    return %arg0, %arg2 : i32, i32
  }
  func.func @transform_1(%arg0: i32, %arg1: i32, %arg2: i32) -> (i32, i32) {
    %c0_i32 = arith.constant 0 : i32
    return %arg2, %arg1 : i32, i32
  }
  func.func @transform_2(%arg0: i32, %arg1: i32, %arg2: i32) -> (i32, i32) {
    %c0_i32 = arith.constant 0 : i32
    %c0_i32_0 = arith.constant 0 : i32
    return %c0_i32, %arg1 : i32, i32
  }
  func.func @transform_3(%arg0: i32, %arg1: i32, %arg2: i32) -> (i32, i32) {
    %c0_i32 = arith.constant 0 : i32
    return %arg0, %arg1 : i32, i32
  }
}

</mosaic_0001>

<llo_original>
// kernel: tpu_custom_call.1
$region0: #{tpu_custom_call.1}
  #allocation0 [shape = 'u32[]', space=smem, size = 0x4, offset = 0x4, fixed_abs, tag = 'smem constant byte address 0x4 - core index']
  #allocation1 [shape = 'u32[144,128]{1,0:T(1,128)}', space=vmem, size = 0x12000, scoped, tag = 'internal scratch']
  #allocation2 [shape = 'f32[16,128]{1,0:T(8,128)}', space=vmem, size = 0x2000, scoped, tag = 'scratch operand']
  %s0 = inlined_call_operand.hbm [shape: f32[16,128], index: 0, kind: input, shape index: {}]
  %s1 = inlined_call_operand.hbm [shape: f32[128,128], index: 1, kind: input, shape index: {}]
  %s2 = inlined_call_operand.vmem [shape: f32[1,128], index: 2, kind: input, shape index: {}]
  %s3 = inlined_call_operand.hbm [shape: f32[16,128], index: 3, kind: output, shape index: {}]
  %s4 = sld [smem:[#allocation0]]
  $region38: #{tpu_custom_call.1} parent=0
    _
  %s6 = ssub.s32 1, %s4
  %s7 = scalar_select 0, %s6, %s4
  $region1: #{tpu_custom_call.1} parent=0
    #allocation3 [shape = 'u8[8192]{0}', space=vmem, size = 0x2000, scoped, tag = 'input window, operand 0, single buffered']
    #allocation4 [shape = 's32[1]{0}', space=sflag, size = 0x4, scoped, tag = 'scoped memory for tpu_custom_call.1']
    #allocation5 [shape = 's32[1]{0}', space=sflag, size = 0x4, scoped, tag = 'scoped memory for tpu_custom_call.1']
    #allocation6 [shape = 'u8[65536]{0}', space=vmem, size = 0x10000, scoped, tag = 'input window, operand 1, single buffered']
    #allocation7 [shape = 's32[1]{0}', space=sflag, size = 0x4, scoped, tag = 'scoped memory for tpu_custom_call.1']
    #allocation8 [shape = 'u8[8192]{0}', space=vmem, size = 0x2000, scoped, tag = 'output window, operand 0, single buffered']
    %8 = vsyncpa [#allocation4], 0
    %9 = vsyncpa [#allocation7], 0
    %10 = vsyncpa [#allocation5], 0
    // Predicated region
    $region2: #{tpu_custom_call.1} parent=1 // pred_check
      _
    $region3: #{tpu_custom_call.1} parent=1 // pred_check_branch
      %12 = sbr.rel (0) target = $region5
    $region4: #{tpu_custom_call.1} parent=1 // pred_region
      %s14 = ssub.s32 256, 256
      %15 = vsyncadd [#allocation4], %s14
      %s16 = sshll.u32 [#allocation3], 4
      %s17 = int_to_ptr.vmem [resolvable:$true] %s16
      %22 = dma.hbm_to_vmem [thread:$0]  %s0, 256, %s17, [#allocation4], 128, 128, 8
    $region5: #{tpu_custom_call.1} parent=1 // pred_fallthru
      _
    // Predicated region
    $region6: #{tpu_custom_call.1} parent=1 // pred_check
      _
    $region7: #{tpu_custom_call.1} parent=1 // pred_check_branch
      %24 = sbr.rel (0) target = $region9
    $region8: #{tpu_custom_call.1} parent=1 // pred_region
      %s26 = ssub.s32 2048, 2048
      %27 = vsyncadd [#allocation7], %s26
      %s28 = sshll.u32 [#allocation6], 4
      %s29 = int_to_ptr.vmem [resolvable:$true] %s28
      %34 = dma.hbm_to_vmem [thread:$0]  %s1, 2048, %s29, [#allocation7], 128, 128, 8
    $region9: #{tpu_custom_call.1} parent=1 // pred_fallthru
      _
    // Predicated region
    $region10: #{tpu_custom_call.1} parent=1 // pred_check
      _
    $region11: #{tpu_custom_call.1} parent=1 // pred_check_branch
      %36 = sbr.rel (0) target = $region13
    $region12: #{tpu_custom_call.1} parent=1 // pred_region
      _
    $region13: #{tpu_custom_call.1} parent=1 // pred_fallthru
      _
    // Predicated region
    $region14: #{tpu_custom_call.1} parent=1 // pred_check
      _
    $region15: #{tpu_custom_call.1} parent=1 // pred_check_branch
      %38 = sbr.rel (0) target = $region17
    $region16: #{tpu_custom_call.1} parent=1 // pred_region
      %39 = dma.done [#allocation4], 256
    $region17: #{tpu_custom_call.1} parent=1 // pred_fallthru
      _
    // Predicated region
    $region18: #{tpu_custom_call.1} parent=1 // pred_check
      _
    $region19: #{tpu_custom_call.1} parent=1 // pred_check_branch
      %41 = sbr.rel (0) target = $region21
    $region20: #{tpu_custom_call.1} parent=1 // pred_region
      %42 = dma.done [#allocation7], 2048
    $region21: #{tpu_custom_call.1} parent=1 // pred_fallthru
      _
    %p43 = scmp.eq.s32.totalorder 0, 0
    // Predicated region
    $region22: #{tpu_custom_call.1} parent=1 // pred_check
      %p44 = pneg %p43
    $region23: #{tpu_custom_call.1} parent=1 // pred_check_branch
      %46 = sbr.rel (%p44) target = $region25
    $region24: #{tpu_custom_call.1} parent=1 // pred_region
      %47 = vst [vmem:[#allocation2] sm:$0xff] 0.0
      %48 = vst [vmem:[#allocation2 + $0x8] sm:$0xff] 0.0
    $region25: #{tpu_custom_call.1} parent=1 // pred_fallthru
      _
    %v49 = vld [vmem:[#allocation2] sm:$0xff]
    %v50 = vld [vmem:[#allocation2 + $0x8] sm:$0xff]
    %v51 = vld [vmem:[#allocation3] sm:$0xff]
    %v52 = vld [vmem:[#allocation3 + $0x8] sm:$0xff]
    %v53 = vld [vmem:[#allocation6] sm:$0xff]
    %v54 = vld [vmem:[#allocation6 + $0x8] sm:$0xff]
    %v55 = vld [vmem:[#allocation6 + $0x10] sm:$0xff]
    %v56 = vld [vmem:[#allocation6 + $0x18] sm:$0xff]
    %v57 = vld [vmem:[#allocation6 + $0x20] sm:$0xff]
    %v58 = vld [vmem:[#allocation6 + $0x28] sm:$0xff]
    %v59 = vld [vmem:[#allocation6 + $0x30] sm:$0xff]
    %v60 = vld [vmem:[#allocation6 + $0x38] sm:$0xff]
    %v61 = vld [vmem:[#allocation6 + $0x40] sm:$0xff]
    %v62 = vld [vmem:[#allocation6 + $0x48] sm:$0xff]
    %v63 = vld [vmem:[#allocation6 + $0x50] sm:$0xff]
    %v64 = vld [vmem:[#allocation6 + $0x58] sm:$0xff]
    %v65 = vld [vmem:[#allocation6 + $0x60] sm:$0xff]
    %v66 = vld [vmem:[#allocation6 + $0x68] sm:$0xff]
    %v67 = vld [vmem:[#allocation6 + $0x70] sm:$0xff]
    %v68 = vld [vmem:[#allocation6 + $0x78] sm:$0xff]
    %69 = vmatprep.subr.mxu0 0.0
    %70 = vmatpush1.msra.mxu0 %v53
    %71 = vmatprep.subr.mxu0 0.0
    %72 = vmatpush1.msra.mxu0 %v54
    %73 = vmatprep.subr.mxu0 0.0
    %74 = vmatpush1.msra.mxu0 %v55
    %75 = vmatprep.subr.mxu0 0.0
    %76 = vmatpush1.msra.mxu0 %v56
    %77 = vmatprep.subr.mxu0 0.0
    %78 = vmatpush1.msra.mxu0 %v57
    %79 = vmatprep.subr.mxu0 0.0
    %80 = vmatpush1.msra.mxu0 %v58
    %81 = vmatprep.subr.mxu0 0.0
    %82 = vmatpush1.msra.mxu0 %v59
    %83 = vmatprep.subr.mxu0 0.0
    %84 = vmatpush1.msra.mxu0 %v60
    %85 = vmatprep.subr.mxu0 0.0
    %86 = vmatpush1.msra.mxu0 %v61
    %87 = vmatprep.subr.mxu0 0.0
    %88 = vmatpush1.msra.mxu0 %v62
    %89 = vmatprep.subr.mxu0 0.0
    %90 = vmatpush1.msra.mxu0 %v63
    %91 = vmatprep.subr.mxu0 0.0
    %92 = vmatpush1.msra.mxu0 %v64
    %93 = vmatprep.subr.mxu0 0.0
    %94 = vmatpush1.msra.mxu0 %v65
    %95 = vmatprep.subr.mxu0 0.0
    %96 = vmatpush1.msra.mxu0 %v66
    %97 = vmatprep.subr.mxu0 0.0
    %98 = vmatpush1.msra.mxu0 %v67
    %99 = vmatprep.subr.mxu0 0.0
    %100 = vmatpush1.msra.mxu0 %v68
    %101 = vmatprep.subr.mxu0 0.0
    %102 = vmatpush1.msra.mxu0 0.0
    %103 = vmatprep.subr.mxu0 0.0
    %104 = vmatpush1.msra.mxu0 0.0
    %105 = vmatprep.subr.mxu0 0.0
    %106 = vmatpush1.msra.mxu0 0.0
    %107 = vmatprep.subr.mxu0 0.0
    %108 = vmatpush1.msra.mxu0 0.0
    %109 = vmatprep.subr.mxu0 0.0
    %110 = vmatpush1.msra.mxu0 0.0
    %111 = vmatprep.subr.mxu0 0.0
    %112 = vmatpush1.msra.mxu0 0.0
    %113 = vmatprep.subr.mxu0 0.0
    %114 = vmatpush1.msra.mxu0 0.0
    %115 = vmatprep.subr.mxu0 0.0
    %116 = vmatpush1.msra.mxu0 0.0
    %117 = vmatprep.subr.mxu0 0.0
    %118 = vmatpush1.msra.mxu0 0.0
    %119 = vmatprep.subr.mxu0 0.0
    %120 = vmatpush1.msra.mxu0 0.0
    %121 = vmatprep.subr.mxu0 0.0
    %122 = vmatpush1.msra.mxu0 0.0
    %123 = vmatprep.subr.mxu0 0.0
    %124 = vmatpush1.msra.mxu0 0.0
    %125 = vmatprep.subr.mxu0 0.0
    %126 = vmatpush1.msra.mxu0 0.0
    %127 = vmatprep.subr.mxu0 0.0
    %128 = vmatpush1.msra.mxu0 0.0
    %129 = vmatprep.subr.mxu0 0.0
    %130 = vmatpush1.msra.mxu0 0.0
    %131 = vmatprep.subr.mxu0 0.0
    %132 = vmatpush1.msra.mxu0 0.0
    %133 = vmatprep.mubr.f32.mxu0 0.0
    %134 = vmatmul.mubr.f32.gmra.mrb[0].mxu0 %v51
    %v135 = vpop.f32.mrb[0].mxu0
    %v136 = vadd.f32 0.0, %v135
    %v137 = vpop.f32.mrb[0].mxu0
    %138 = vmatprep.mubr.f32.mxu0 0.0
    %139 = vmatmul.mubr.f32.gmra.mrb[0].mxu0 %v52
    %v140 = vpop.f32.mrb[0].mxu0
    %v141 = vadd.f32 0.0, %v140
    %v142 = vpop.f32.mrb[0].mxu0
    %143 = vdwg.mxu0
    %v144 = vadd.f32 %v49, %v136
    %v145 = vadd.f32 %v50, %v141
    %146 = vst [vmem:[#allocation2] sm:$0xff] %v144
    %147 = vst [vmem:[#allocation2 + $0x8] sm:$0xff] %v145
    // Predicated region
    $region26: #{tpu_custom_call.1} parent=1 // pred_check
      %p148 = pneg %p43
    $region27: #{tpu_custom_call.1} parent=1 // pred_check_branch
      %150 = sbr.rel (%p148) target = $region29
    $region28: #{tpu_custom_call.1} parent=1 // pred_region
      %v151 = vld [vmem:[#allocation2] sm:$0xff]
      %v152 = vld [vmem:[#allocation2 + $0x8] sm:$0xff]
      %v153 = vld [vmem:[%s2] sm:$0x1]
      %v155 = vlaneseq
      %v156 = vshrl.u32 %v155, 7
      %v157 = vsub.s32 0, %v156
      %v158 = vrot.slane %v153, %v157
      %v160 = vadd.f32 %v151, %v158
      %v161 = vadd.f32 %v152, %v158
      %162 = vst [vmem:[#allocation8] sm:$0xff] %v160
      %163 = vst [vmem:[#allocation8 + $0x8] sm:$0xff] %v161
    $region29: #{tpu_custom_call.1} parent=1 // pred_fallthru
      _
    // Predicated region
    $region30: #{tpu_custom_call.1} parent=1 // pred_check
      _
    $region31: #{tpu_custom_call.1} parent=1 // pred_check_branch
      %165 = sbr.rel (0) target = $region33
    $region32: #{tpu_custom_call.1} parent=1 // pred_region
      %s167 = ssub.s32 256, 256
      %168 = vsyncadd [#allocation5], %s167
      %s169 = sshll.u32 [#allocation8], 4
      %s170 = int_to_ptr.vmem [resolvable:$true] %s169
      %175 = dma.vmem_to_hbm [thread:$0]  %s170, 256, %s3, [#allocation5], 128, 128, 8
    $region33: #{tpu_custom_call.1} parent=1 // pred_fallthru
      _
    // Predicated region
    $region34: #{tpu_custom_call.1} parent=1 // pred_check
      _
    $region35: #{tpu_custom_call.1} parent=1 // pred_check_branch
      %177 = sbr.rel (0) target = $region37
    $region36: #{tpu_custom_call.1} parent=1 // pred_region
      %178 = dma.done [#allocation5], 256
    $region37: #{tpu_custom_call.1} parent=1 // pred_fallthru
      _
    %179 = vsyncpa [#allocation4], 1
    %180 = vsyncpa [#allocation7], 1
    %181 = vsyncpa [#allocation5], 1

</llo_original>
